<compile_context>
chip_gen: v5e
topology: v5e:2x2
jax: 0.10.0
libtpu: 0.0.40
codegen_flags: <defaults>
</compile_context>

<pallas_src>
import math

import jax
import jax.numpy as jnp
from jax.experimental import pallas as pl
from jax.experimental.pallas import tpu as pltpu


# ----------------------------------------------------------------------------
# Buffer construction (mirrors PositionEncodingSine.__init__)
# ----------------------------------------------------------------------------
def make_position_encoding(d_model, max_shape=(600, 600), temp_bug_fix=True):
    """Build the (1, d_model, maxH, maxW) sinusoidal buffer, like the torch init."""
    assert d_model % 4 == 0, "d_model must be a multiple of 4"
    H, W = max_shape
    y_position = jnp.cumsum(jnp.ones((H, W), jnp.float32), axis=0)[None]  # (1,H,W)
    x_position = jnp.cumsum(jnp.ones((H, W), jnp.float32), axis=1)[None]  # (1,H,W)
    if temp_bug_fix:
        div_term = jnp.exp(
            jnp.arange(0, d_model // 2, 2, dtype=jnp.float32)
            * (-math.log(10000.0) / (d_model // 2))
        )
    else:
        # Faithful to the original (buggy) LoFTR precedence:
        # (-log(1e4) / d_model) // 2  -- floor division, typically -1.0.
        div_term = jnp.exp(
            jnp.arange(0, d_model // 2, 2, dtype=jnp.float32)
            * (-math.log(10000.0) / d_model // 2)
        )
    div_term = div_term[:, None, None]  # (d_model//4, 1, 1)

    pe = jnp.zeros((d_model, H, W), jnp.float32)
    pe = pe.at[0::4].set(jnp.sin(x_position * div_term))
    pe = pe.at[1::4].set(jnp.cos(x_position * div_term))
    pe = pe.at[2::4].set(jnp.sin(y_position * div_term))
    pe = pe.at[3::4].set(jnp.cos(y_position * div_term))
    return pe[None]  # (1, d_model, maxH, maxW)


# ----------------------------------------------------------------------------
# Pallas kernel: out = x + pe  (pe broadcast over the batch axis)
# ----------------------------------------------------------------------------
def _add_pe_kernel(x_ref, pe_ref, o_ref):
    # x_ref: (1, TC, THW), pe_ref: (TC, THW), o_ref: (1, TC, THW); same dtype.
    o_ref[...] = x_ref[...] + pe_ref[...]


def _vmem_capacity_bytes():
    """Physical VMEM per core; conservative 64 MiB (v7x) if the query fails."""
    try:
        info = pltpu.get_tpu_info()
        cap = int(getattr(info, "vmem_capacity_bytes"))
        if cap > 0:
            return cap
    except Exception:
        pass
    return 64 * 1024 * 1024


def _pick_tiles(N, C, HW, itemsize, block_cap, min_steps=4,
                min_split_bytes=256 * 1024):
    """Pick (channel_tile, lane_tile) for (TC, THW) blocks of the given itemsize.

    - lane tile is the full HW axis when it fits, else a multiple of 128
    - channel tile is the full C axis or a multiple of 8 (16 for 2-byte dtypes)
    - block bytes stay under `block_cap` (per operand; Pallas double-buffers)
    - blocks are split further (down to `min_split_bytes`) until the grid has
      at least `min_steps` steps so both v7x TensorCores get work and the DMA
      pipeline actually overlaps compute.
    """
    sub = 16 if itemsize == 2 else 8

    # Start with the whole flattened spatial axis as the lane dimension.
    THW = HW
    max_tc = max(1, block_cap // max(1, THW * itemsize))
    if max_tc >= C:
        TC = C
    else:
        TC = min(C, max(sub, (max_tc // sub) * sub))

    # Even a minimal channel tile may blow the cap for huge maps (e.g. 600x600):
    # tile the lane axis too, in multiples of 128.
    if TC * THW * itemsize > block_cap and HW > 128:
        THW = max(128, ((block_cap // max(1, TC * itemsize)) // 128) * 128)

    def n_steps(tc, thw):
        return N * pl.cdiv(C, tc) * pl.cdiv(HW, thw)

    def block_bytes(tc, thw):
        return tc * thw * itemsize

    # Split blocks until there are enough grid steps, but never go tiny.
    while (n_steps(TC, THW) < min_steps
           and block_bytes(TC, THW) >= 2 * min_split_bytes):
        if TC >= 2 * sub:
            TC = max(sub, ((TC // 2) // sub) * sub)
        elif THW >= 256:
            THW = max(128, ((THW // 2) // 128) * 128)
        else:
            break
    return TC, THW


@jax.jit
def _position_encoding_add(x, pe2):
    """x: (N, C, H, W); pe2: (C, H*W) already sliced to (H, W) and in x.dtype."""
    N, C, H, W = x.shape
    HW = H * W
    assert pe2.shape == (C, HW) and pe2.dtype == x.dtype

    x3 = x.reshape(N, C, HW)  # free reshape (contiguous merge of H, W)

    itemsize = jnp.dtype(x.dtype).itemsize
    vmem_cap = _vmem_capacity_bytes()
    block_cap = max(512 * 1024, vmem_cap // 16)            # ~8 MiB v5e/v6e, ~4 MiB v7x
    vmem_limit = int(min(64 * 1024 * 1024, (vmem_cap * 3) // 4))

    TC, THW = _pick_tiles(N, C, HW, itemsize, block_cap)
    grid = (pl.cdiv(C, TC), pl.cdiv(HW, THW), N)           # batch innermost => pe DMA reused

    out = pl.pallas_call(
        _add_pe_kernel,
        out_shape=jax.ShapeDtypeStruct((N, C, HW), x.dtype),
        grid=grid,
        in_specs=[
            pl.BlockSpec((1, TC, THW), lambda c, h, n: (n, c, h)),  # x tile
            pl.BlockSpec((TC, THW), lambda c, h, n: (c, h)),        # pe tile (batch-invariant)
        ],
        out_specs=pl.BlockSpec((1, TC, THW), lambda c, h, n: (n, c, h)),
        compiler_params=pltpu.CompilerParams(
            dimension_semantics=("parallel", "parallel", "parallel"),
            vmem_limit_bytes=vmem_limit,
        ),
    )(x3, pe2)

    return out.reshape(N, C, H, W)


# ----------------------------------------------------------------------------
# Module-like wrapper with a cached, resolution/dtype-matched PE slab
# ----------------------------------------------------------------------------
class PositionEncodingSine:
    def __init__(self, d_model, max_shape=(600, 600), temp_bug_fix=True):
        self.pe = make_position_encoding(d_model, max_shape, temp_bug_fix)
        self._slab_cache = {}

    def _pe_slab(self, H, W, dtype):
        key = (H, W, jnp.dtype(dtype).name)
        slab = self._slab_cache.get(key)
        if slab is None:
            C = self.pe.shape[1]
            # Non-contiguous slice + reshape + cast: done ONCE per resolution,
            # outside the jitted forward, then reused across all forwards.
            slab = self.pe[0, :, :H, :W].reshape(C, H * W).astype(dtype)
            slab = jax.block_until_ready(slab)
            self._slab_cache[key] = slab
        return slab

    def __call__(self, x):
        N, C, H, W = x.shape
        assert C == self.pe.shape[1]
        assert H <= self.pe.shape[2] and W <= self.pe.shape[3]
        pe2 = self._pe_slab(H, W, x.dtype)
        return _position_encoding_add(x, pe2)


# ----------------------------------------------------------------------------
# Demo / correctness check
# ----------------------------------------------------------------------------
if __name__ == "__main__":
    key = jax.random.PRNGKey(0)

    N, C, H, W = 2, 32, 16, 16                    # d_model=32, 16x16 feature map
    x = jax.random.normal(key, (N, C, H, W), jnp.float32)

    # Buffer built at a larger max_shape and sliced in forward, like the module.
    module = PositionEncodingSine(C, max_shape=(32, 32), temp_bug_fix=True)

    out = module(x)
    out = jax.block_until_ready(out)

    ref = x + module.pe[:, :, :H, :W]
    assert out.shape == (N, C, H, W), out.shape
    assert jnp.allclose(out, ref, atol=1e-6, rtol=1e-6), float(
        jnp.max(jnp.abs(out - ref))
    )

    print("KERNEL_OK")
</pallas_src>

<mosaic_0001>
module attributes {stable_mosaic.version = 11 : i64} {
  func.func @_add_pe_kernel(%arg0: i32, %arg1: i32, %arg2: i32, %arg3: memref<1x32x256xf32, #tpu.memory_space<vmem>>, %arg4: memref<32x256xf32, #tpu.memory_space<vmem>>, %arg5: memref<1x32x256xf32, #tpu.memory_space<vmem>>) attributes {dimension_semantics = [#tpu.dimension_semantics<parallel>, #tpu.dimension_semantics<parallel>, #tpu.dimension_semantics<parallel>], iteration_bounds = array<i64: 1, 1, 2>, scalar_prefetch = 0 : i64, scratch_operands = 0 : i64, tpu.core_type = #tpu.core_type<tc>, window_params = [{transform_indices = @transform_0, window_bounds = array<i64: 1, 32, 256>}, {transform_indices = @transform_1, window_bounds = array<i64: 32, 256>}, {transform_indices = @transform_2, window_bounds = array<i64: 1, 32, 256>}]} {
    %c0 = arith.constant 0 : index
    %c0_0 = arith.constant 0 : index
    %c0_1 = arith.constant 0 : index
    %0 = vector.load %arg3[%c0, %c0_0, %c0_1] : memref<1x32x256xf32, #tpu.memory_space<vmem>>, vector<1x32x256xf32>
    %c0_2 = arith.constant 0 : index
    %c0_3 = arith.constant 0 : index
    %1 = vector.load %arg4[%c0_2, %c0_3] : memref<32x256xf32, #tpu.memory_space<vmem>>, vector<32x256xf32>
    %2 = vector.shape_cast %1 : vector<32x256xf32> to vector<1x32x256xf32>
    %3 = arith.addf %0, %2 : vector<1x32x256xf32>
    %c0_4 = arith.constant 0 : index
    %c0_5 = arith.constant 0 : index
    %c0_6 = arith.constant 0 : index
    %4 = vector.load %arg5[%c0_4, %c0_5, %c0_6] : memref<1x32x256xf32, #tpu.memory_space<vmem>>, vector<1x32x256xf32>
    tpu.vector_store %arg5[%c0_4, %c0_5, %c0_6], %3 {strides = array<i32>} : memref<1x32x256xf32, #tpu.memory_space<vmem>>, vector<1x32x256xf32>,
    return
  }
  func.func @transform_0(%arg0: i32, %arg1: i32, %arg2: i32) -> (i32, i32, i32) {
    %c0_i32 = arith.constant 0 : i32
    return %arg2, %arg0, %arg1 : i32, i32, i32
  }
  func.func @transform_1(%arg0: i32, %arg1: i32, %arg2: i32) -> (i32, i32) {
    %c0_i32 = arith.constant 0 : i32
    return %arg0, %arg1 : i32, i32
  }
  func.func @transform_2(%arg0: i32, %arg1: i32, %arg2: i32) -> (i32, i32, i32) {
    %c0_i32 = arith.constant 0 : i32
    return %arg2, %arg0, %arg1 : i32, i32, i32
  }
}

</mosaic_0001>

<llo_original>
// kernel: _position_encoding_add.1
$region0: #{_position_encoding_add.1}
  #allocation0 [shape = 'u32[]', space=smem, size = 0x4, offset = 0x4, fixed_abs, tag = 'smem constant byte address 0x4 - core index']
  #allocation1 [shape = 'u32[72,128]{1,0:T(1,128)}', space=vmem, size = 0x9000, scoped, tag = 'internal scratch']
  %s0 = inlined_call_operand.vmem [shape: f32[2,32,256], index: 0, kind: input, shape index: {}]
  %s1 = inlined_call_operand.vmem [shape: f32[32,256], index: 1, kind: input, shape index: {}]
  %s2 = inlined_call_operand.vmem [shape: f32[2,32,256], index: 2, kind: output, shape index: {}]
  %s3 = sld [smem:[#allocation0]]
  $region41: #{_position_encoding_add.1} parent=0
    _
  %s5 = ssub.s32 1, %s3
  %s6 = scalar_select 0, %s5, %s3
  loop: start=0, step=1, limit=4
  $region2: #{_position_encoding_add.1} parent=0 // loop_pre_header
    _
  $region3: #{_position_encoding_add.1} parent=0 // loop_header
    %s8 = sphi 0, %s12
    %p9 = scmp.ge.s32.totalorder %s8, 4
    %s15 = sphi 0, %s34
    %s16 = sphi 0, %s30
    %s17 = sphi 0, %s26
    %s18 = sphi 0, %s15
    %s19 = sphi 0, %s16
    %s20 = sphi 0, %s17
    %s21 = sphi 0, %s18
    %s22 = sphi 0, %s19
    %s23 = sphi 0, %s20
    %s41 = sphi 0, %s43
    %s44 = sphi 0, %s41
    %s45 = sphi 0, %s44
    %s61 = sphi 0, %s45
    %s69 = sphi 0, %s71
    %s72 = sphi 0, %s69
    %s73 = sphi 0, %s72
    %s89 = sphi 0, %s73
    %s99 = sphi 0, %s101
    %s102 = sphi 0, %s99
    %s103 = sphi 0, %s102
    %s119 = sphi 0, %s103
  $region4: #{_position_encoding_add.1} parent=0 // loop_header_branch
    %11 = sbr.rel (%p9) target = $region8
  $region5: #{_position_encoding_add.1} parent=0 // loop_body
    %s13 = ssub.s32 %s8, 1
    %s14 = ssub.s32 %s8, 2
    %s24 = sadd.s32 1, %s17
    %p25 = scmp.ge.s32.totalorder %s24, 2
    %s26 = scalar_select %p25, 0, %s24
    %s27 = sadd.s32 1, %s16
    %s28 = scalar_select %p25, %s27, %s16
    %p29 = scmp.ge.s32.totalorder %s28, 1
    %s30 = scalar_select %p29, 0, %s28
    %s31 = sadd.s32 1, %s15
    %s32 = scalar_select %p29, %s31, %s15
    %p33 = scmp.ge.s32.totalorder %s32, 1
    %s34 = scalar_select %p33, 0, %s32
    %s35 = ssub.s32 %s17, %s26
    %s36 = ssub.s32 %s15, %s34
    %s37 = sor.u32 %s35, %s36
    %s38 = ssub.s32 %s16, %s30
    %s39 = sor.u32 %s37, %s38
    %p40 = scmp.eq.s32.totalorder %s39, 0
    %s42 = sadd.s32 %s41, 1
    %s43 = scalar_select %p40, %s41, %s42
    %p46 = pneg %p40
    %p47 = scmp.eq.s32.totalorder %s8, 1
    %p48 = por %p46, %p47
    %p49 = scmp.ne.s32.totalorder %s41, %s44
    %p50 = scmp.eq.s32.totalorder %s8, 0
    %p51 = por %p49, %p50
    %p52 = scmp.ne.s32.totalorder %s41, %s44
    %p53 = scmp.eq.s32.totalorder %s13, 1
    %p54 = por %p52, %p53
    %p55 = scmp.ne.s32.totalorder %s44, %s45
    %p56 = scmp.eq.s32.totalorder %s13, 0
    %p57 = por %p55, %p56
    %p58 = scmp.ne.s32.totalorder %s44, %s45
    %p59 = scmp.eq.s32.totalorder %s14, 1
    %p60 = por %p58, %p59
    %p62 = scmp.ne.s32.totalorder %s45, %s61
    %p63 = scmp.eq.s32.totalorder %s14, 0
    %p64 = por %p62, %p63
    %s65 = ssub.s32 %s15, %s34
    %s66 = ssub.s32 %s16, %s30
    %s67 = sor.u32 %s65, %s66
    %p68 = scmp.eq.s32.totalorder %s67, 0
    %s70 = sadd.s32 %s69, 1
    %s71 = scalar_select %p68, %s69, %s70
    %p74 = pneg %p68
    %p75 = scmp.eq.s32.totalorder %s8, 1
    %p76 = por %p74, %p75
    %p77 = scmp.ne.s32.totalorder %s69, %s72
    %p78 = scmp.eq.s32.totalorder %s8, 0
    %p79 = por %p77, %p78
    %p80 = scmp.ne.s32.totalorder %s69, %s72
    %p81 = scmp.eq.s32.totalorder %s13, 1
    %p82 = por %p80, %p81
    %p83 = scmp.ne.s32.totalorder %s72, %s73
    %p84 = scmp.eq.s32.totalorder %s13, 0
    %p85 = por %p83, %p84
    %p86 = scmp.ne.s32.totalorder %s72, %s73
    %p87 = scmp.eq.s32.totalorder %s14, 1
    %p88 = por %p86, %p87
    %p90 = scmp.ne.s32.totalorder %s73, %s89
    %p91 = scmp.eq.s32.totalorder %s14, 0
    %p92 = por %p90, %p91
    %s93 = ssub.s32 %s17, %s26
    %s94 = ssub.s32 %s15, %s34
    %s95 = sor.u32 %s93, %s94
    %s96 = ssub.s32 %s16, %s30
    %s97 = sor.u32 %s95, %s96
    %p98 = scmp.eq.s32.totalorder %s97, 0
    %s100 = sadd.s32 %s99, 1
    %s101 = scalar_select %p98, %s99, %s100
    %p104 = pneg %p98
    %p105 = scmp.eq.s32.totalorder %s8, 1
    %p106 = por %p104, %p105
    %p107 = scmp.ne.s32.totalorder %s99, %s102
    %p108 = scmp.eq.s32.totalorder %s8, 0
    %p109 = por %p107, %p108
    %p110 = scmp.ne.s32.totalorder %s99, %s102
    %p111 = scmp.eq.s32.totalorder %s13, 1
    %p112 = por %p110, %p111
    %p113 = scmp.ne.s32.totalorder %s102, %s103
    %p114 = scmp.eq.s32.totalorder %s13, 0
    %p115 = por %p113, %p114
    %p116 = scmp.ne.s32.totalorder %s102, %s103
    %p117 = scmp.eq.s32.totalorder %s14, 1
    %p118 = por %p116, %p117
    %p120 = scmp.ne.s32.totalorder %s103, %s119
    %p121 = scmp.eq.s32.totalorder %s14, 0
    %p122 = por %p120, %p121
    %p123 = scmp.le.s32.totalorder 1, %s8
    %p124 = scmp.lt.s32.totalorder %s8, 3
    %p125 = pnand %p123, %p124
    %p126 = pneg %p125
    // Predicated region
    $region9: #{_position_encoding_add.1} parent=5 // pred_check
      _
    $region10: #{_position_encoding_add.1} parent=5 // pred_check_branch
      %128 = sbr.rel (%p125) target = $region12
    $region11: #{_position_encoding_add.1} parent=5 // pred_region
      %s129 = ssub.s32 %s8, 1
      // Predicated region
      $region13: #{_position_encoding_add.1} parent=11 // pred_check
        %p130 = pneg %p85
      $region14: #{_position_encoding_add.1} parent=11 // pred_check_branch
        %132 = sbr.rel (%p130) target = $region16
      $region15: #{_position_encoding_add.1} parent=11 // pred_region
        %s133 = smul.u32 4, %s18
        %s134 = smul.u32 2, %s19
        %p135 = scmp.lt.s32.totalorder %s133, 3
        %s136 = scalar_select %p135, %s133, 3
        %p137 = scmp.lt.s32.totalorder %s134, 1
        %s138 = scalar_select %p137, %s134, 1
        %s139 = smul.addr %s136, 2
        %s140 = sadd.s32 %s138, %s139
        %s141 = smul.addr %s140, 8
        %s142 = scalar_lea.vmem %s1, %s141
        %s143 = smul.u32 4, %s18
        %s144 = smul.u32 2, %s19
      $region16: #{_position_encoding_add.1} parent=11 // pred_fallthru
        _
    $region12: #{_position_encoding_add.1} parent=5 // pred_fallthru
      _
    %p145 = scmp.lt.s32.totalorder %s8, 2
    // Predicated region
    $region17: #{_position_encoding_add.1} parent=5 // pred_check
      %p146 = pneg %p145
    $region18: #{_position_encoding_add.1} parent=5 // pred_check_branch
      %148 = sbr.rel (%p146) target = $region20
    $region19: #{_position_encoding_add.1} parent=5 // pred_region
      // Predicated region
      $region21: #{_position_encoding_add.1} parent=19 // pred_check
        %p149 = pneg %p51
      $region22: #{_position_encoding_add.1} parent=19 // pred_check_branch
        %151 = sbr.rel (%p149) target = $region24
      $region23: #{_position_encoding_add.1} parent=19 // pred_region
        %s152 = smul.u32 4, %s15
        %s153 = smul.u32 2, %s16
        %p154 = scmp.lt.s32.totalorder %s17, 1
        %s155 = scalar_select %p154, %s17, 1
        %p156 = scmp.lt.s32.totalorder %s152, 3
        %s157 = scalar_select %p156, %s152, 3
        %p158 = scmp.lt.s32.totalorder %s153, 1
        %s159 = scalar_select %p158, %s153, 1
        %s160 = smul.addr %s157, 2
        %s161 = sadd.s32 %s159, %s160
        %s162 = smul.addr %s155, 8
        %s163 = sadd.s32 %s161, %s162
        %s164 = smul.addr %s163, 8
        %s165 = scalar_lea.vmem %s0, %s164
        %s166 = smul.u32 4, %s15
        %s167 = smul.u32 2, %s16
      $region24: #{_position_encoding_add.1} parent=19 // pred_fallthru
        _
    $region20: #{_position_encoding_add.1} parent=5 // pred_fallthru
      _
    %p168 = scmp.le.s32.totalorder 1, %s8
    %p169 = scmp.lt.s32.totalorder %s8, 3
    %p170 = pnand %p168, %p169
    %p171 = pneg %p170
    // Predicated region
    $region25: #{_position_encoding_add.1} parent=5 // pred_check
      _
    $region26: #{_position_encoding_add.1} parent=5 // pred_check_branch
      %173 = sbr.rel (%p170) target = $region28
    $region27: #{_position_encoding_add.1} parent=5 // pred_region
      %s174 = ssub.s32 %s8, 1
      %s175 = smul.u32 4, %s18
      %s176 = smul.u32 2, %s19
      %p177 = scmp.lt.s32.totalorder %s20, 1
      %s178 = scalar_select %p177, %s20, 1
      %p179 = scmp.lt.s32.totalorder %s175, 3
      %s180 = scalar_select %p179, %s175, 3
      %p181 = scmp.lt.s32.totalorder %s176, 1
      %s182 = scalar_select %p181, %s176, 1
      %s183 = smul.addr %s180, 2
      %s184 = sadd.s32 %s182, %s183
      %s185 = smul.addr %s178, 8
      %s186 = sadd.s32 %s184, %s185
      %s187 = smul.addr %s186, 8
      %s188 = scalar_lea.vmem %s0, %s187
      %p189 = pneg %p57
      %p190 = pneg %p54
      %s191 = smul.u32 4, %s18
      %s192 = smul.u32 2, %s19
      %p193 = scmp.lt.s32.totalorder %s191, 3
      %s194 = scalar_select %p193, %s191, 3
      %p195 = scmp.lt.s32.totalorder %s192, 1
      %s196 = scalar_select %p195, %s192, 1
      %s197 = smul.addr %s194, 2
      %s198 = sadd.s32 %s196, %s197
      %s199 = smul.addr %s198, 8
      %s200 = scalar_lea.vmem %s1, %s199
      %p201 = pneg %p85
      %p202 = pneg %p82
      %p203 = pneg %p115
      %p204 = pneg %p112
      %s205 = smul.u32 4, %s18
      %s206 = smul.u32 2, %s19
      %p207 = scmp.lt.s32.totalorder %s20, 1
      %s208 = scalar_select %p207, %s20, 1
      %p209 = scmp.lt.s32.totalorder %s205, 3
      %s210 = scalar_select %p209, %s205, 3
      %p211 = scmp.lt.s32.totalorder %s206, 1
      %s212 = scalar_select %p211, %s206, 1
      %s213 = smul.addr %s210, 2
      %s214 = sadd.s32 %s212, %s213
      %s215 = smul.addr %s208, 8
      %s216 = sadd.s32 %s214, %s215
      %s217 = smul.addr %s216, 8
      %s218 = scalar_lea.vmem %s2, %s217
      %s219 = smul.u32 4, %s18
      %s220 = smul.u32 2, %s19
      %p221 = scmp.lt.s32.totalorder %s20, 1
      %s222 = scalar_select %p221, %s20, 1
      %p223 = scmp.lt.s32.totalorder %s219, 3
      %s224 = scalar_select %p223, %s219, 3
      %p225 = scmp.lt.s32.totalorder %s220, 1
      %s226 = scalar_select %p225, %s220, 1
      %s227 = smul.addr %s224, 2
      %s228 = sadd.s32 %s226, %s227
      %s229 = smul.addr %s222, 8
      %s230 = sadd.s32 %s228, %s229
      %s231 = smul.addr %s230, 8
      %s232 = scalar_lea.vmem %s0, %s231
      %s233 = smul.u32 4, %s18
      %s234 = smul.u32 2, %s19
      %s235 = smul.u32 4, %s18
      %s236 = smul.u32 2, %s19
      %p237 = scmp.lt.s32.totalorder %s235, 3
      %s238 = scalar_select %p237, %s235, 3
      %p239 = scmp.lt.s32.totalorder %s236, 1
      %s240 = scalar_select %p239, %s236, 1
      %s241 = smul.addr %s238, 2
      %s242 = sadd.s32 %s240, %s241
      %s243 = smul.addr %s242, 8
      %s244 = scalar_lea.vmem %s1, %s243
      %s245 = smul.u32 4, %s18
      %s246 = smul.u32 2, %s19
      %s247 = smul.u32 4, %s18
      %s248 = smul.u32 2, %s19
      %p249 = scmp.lt.s32.totalorder %s20, 1
      %s250 = scalar_select %p249, %s20, 1
      %p251 = scmp.lt.s32.totalorder %s247, 3
      %s252 = scalar_select %p251, %s247, 3
      %p253 = scmp.lt.s32.totalorder %s248, 1
      %s254 = scalar_select %p253, %s248, 1
      %s255 = smul.addr %s252, 2
      %s256 = sadd.s32 %s254, %s255
      %s257 = smul.addr %s250, 8
      %s258 = sadd.s32 %s256, %s257
      %s259 = smul.addr %s258, 8
      %s260 = scalar_lea.vmem %s2, %s259
      %s261 = smul.u32 4, %s18
      %s262 = smul.u32 2, %s19
      %v263 = vld [vmem:[%s232] sm:$0xff]
      %v264 = vld [vmem:[%s232 + $0x8] sm:$0xff]
      %v265 = vld [vmem:[%s232 + $0x10] sm:$0xff]
      %v266 = vld [vmem:[%s232 + $0x18] sm:$0xff]
      %v267 = vld [vmem:[%s232 + $0x20] sm:$0xff]
      %v268 = vld [vmem:[%s232 + $0x28] sm:$0xff]
      %v269 = vld [vmem:[%s232 + $0x30] sm:$0xff]
      %v270 = vld [vmem:[%s232 + $0x38] sm:$0xff]
      %v271 = vld [vmem:[%s244] sm:$0xff]
      %v272 = vld [vmem:[%s244 + $0x8] sm:$0xff]
      %v273 = vld [vmem:[%s244 + $0x10] sm:$0xff]
      %v274 = vld [vmem:[%s244 + $0x18] sm:$0xff]
      %v275 = vld [vmem:[%s244 + $0x20] sm:$0xff]
      %v276 = vld [vmem:[%s244 + $0x28] sm:$0xff]
      %v277 = vld [vmem:[%s244 + $0x30] sm:$0xff]
      %v278 = vld [vmem:[%s244 + $0x38] sm:$0xff]
      %v279 = vadd.f32 %v263, %v271
      %v280 = vadd.f32 %v264, %v272
      %v281 = vadd.f32 %v265, %v273
      %v282 = vadd.f32 %v266, %v274
      %v283 = vadd.f32 %v267, %v275
      %v284 = vadd.f32 %v268, %v276
      %v285 = vadd.f32 %v269, %v277
      %v286 = vadd.f32 %v270, %v278
      %287 = vst [vmem:[%s260] sm:$0xff] %v279
      %288 = vst [vmem:[%s260 + $0x8] sm:$0xff] %v280
      %289 = vst [vmem:[%s260 + $0x10] sm:$0xff] %v281
      %290 = vst [vmem:[%s260 + $0x18] sm:$0xff] %v282
      %291 = vst [vmem:[%s260 + $0x20] sm:$0xff] %v283
      %292 = vst [vmem:[%s260 + $0x28] sm:$0xff] %v284
      %293 = vst [vmem:[%s260 + $0x30] sm:$0xff] %v285
      %294 = vst [vmem:[%s260 + $0x38] sm:$0xff] %v286
      %s295 = smul.u32 4, %s18
      %s296 = smul.u32 2, %s19
      %p297 = scmp.lt.s32.totalorder %s20, 1
      %s298 = scalar_select %p297, %s20, 1
      %p299 = scmp.lt.s32.totalorder %s295, 3
      %s300 = scalar_select %p299, %s295, 3
      %p301 = scmp.lt.s32.totalorder %s296, 1
      %s302 = scalar_select %p301, %s296, 1
      %s303 = smul.addr %s300, 2
      %s304 = sadd.s32 %s302, %s303
      %s305 = smul.addr %s298, 8
      %s306 = sadd.s32 %s304, %s305
      %s307 = smul.addr %s306, 8
      %s308 = scalar_lea.vmem %s2, %s307
      // Predicated region
      $region29: #{_position_encoding_add.1} parent=27 // pred_check
        %p309 = pneg %p112
      $region30: #{_position_encoding_add.1} parent=27 // pred_check_branch
        %311 = sbr.rel (%p309) target = $region32
      $region31: #{_position_encoding_add.1} parent=27 // pred_region
        %s312 = smul.u32 4, %s18
        %s313 = smul.u32 2, %s19
      $region32: #{_position_encoding_add.1} parent=27 // pred_fallthru
        _
    $region28: #{_position_encoding_add.1} parent=5 // pred_fallthru
      _
    %p314 = scmp.le.s32.totalorder 2, %s8
    // Predicated region
    $region33: #{_position_encoding_add.1} parent=5 // pred_check
      %p315 = pneg %p314
    $region34: #{_position_encoding_add.1} parent=5 // pred_check_branch
      %317 = sbr.rel (%p315) target = $region36
    $region35: #{_position_encoding_add.1} parent=5 // pred_region
      %s318 = ssub.s32 %s8, 2
      // Predicated region
      $region37: #{_position_encoding_add.1} parent=35 // pred_check
        %p319 = pneg %p118
      $region38: #{_position_encoding_add.1} parent=35 // pred_check_branch
        %321 = sbr.rel (%p319) target = $region40
      $region39: #{_position_encoding_add.1} parent=35 // pred_region
        %s322 = smul.u32 4, %s21
        %s323 = smul.u32 2, %s22
        %p324 = scmp.lt.s32.totalorder %s23, 1
        %s325 = scalar_select %p324, %s23, 1
        %p326 = scmp.lt.s32.totalorder %s322, 3
        %s327 = scalar_select %p326, %s322, 3
        %p328 = scmp.lt.s32.totalorder %s323, 1
        %s329 = scalar_select %p328, %s323, 1
        %s330 = smul.addr %s327, 2
        %s331 = sadd.s32 %s329, %s330
        %s332 = smul.addr %s325, 8
        %s333 = sadd.s32 %s331, %s332
        %s334 = smul.addr %s333, 8
        %s335 = scalar_lea.vmem %s2, %s334
      $region40: #{_position_encoding_add.1} parent=35 // pred_fallthru
        _
    $region36: #{_position_encoding_add.1} parent=5 // pred_fallthru
      _
  $region6: #{_position_encoding_add.1} parent=0 // loop_footer
    %s12 = sadd.s32 1, %s8
  $region7: #{_position_encoding_add.1} parent=0 // loop_footer_branch
    %7 = sbr.rel target = $region3
  $region8: #{_position_encoding_add.1} parent=0 // loop_exit
    _

</llo_original>
